<compile_context>
chip_gen: v5e
topology: v5e:2x2
jax: 0.10.0
libtpu: 0.0.40
codegen_flags: <defaults>
</compile_context>

<pallas_src>
import jax
import jax.numpy as jnp
from jax.experimental import pallas as pl
from jax.experimental.pallas import tpu as pltpu

PAD_SHAPE = (8, 128)  # one (sublane, lane) f32 tile; lane-dense output slab


def _mix32(x):
    """splitmix32-style finalizer on uint32 arrays (pure VPU ops)."""
    x = x ^ (x >> jnp.uint32(16))
    x = x * jnp.uint32(0x7FEB352D)
    x = x ^ (x >> jnp.uint32(15))
    x = x * jnp.uint32(0x846CA68B)
    x = x ^ (x >> jnp.uint32(16))
    return x


def _rand_like_kernel(seed_ref, rand_ref):
    # Per-element counters for the (8, 128) tile.
    rows = jax.lax.broadcasted_iota(jnp.int32, PAD_SHAPE, 0)
    cols = jax.lax.broadcasted_iota(jnp.int32, PAD_SHAPE, 1)
    idx = (rows * PAD_SHAPE[1] + cols).astype(jnp.uint32)

    # Mix counters with the per-call seed (golden-ratio increment), 2 rounds.
    seed = seed_ref[0].astype(jnp.uint32)
    bits = _mix32(idx + (seed + jnp.uint32(1)) * jnp.uint32(0x9E3779B9))
    bits = _mix32(bits ^ jnp.uint32(0x85EBCA6B))

    # Mantissa trick: top 23 random bits -> f32 in [1, 2), then subtract 1.0.
    fbits = (bits >> jnp.uint32(9)) | jnp.uint32(0x3F800000)
    rand_ref[...] = jax.lax.bitcast_convert_type(fbits, jnp.float32) - jnp.float32(1.0)

    # NOTE: x2 = F.dropout(x1, p=0.5) from the torch module is dead code (its
    # result is discarded), so it is intentionally not computed here.


def model_forward(x1, seed):
    """JAX/Pallas equivalent of Model.forward: returns uniform rand_like(x1)."""
    orig_shape = x1.shape
    n = x1.size
    assert n <= PAD_SHAPE[0] * PAD_SHAPE[1], "toy kernel: input must fit one tile"

    seed_arr = jnp.asarray(seed, dtype=jnp.int32).reshape((1,))

    rand_pad = pl.pallas_call(
        _rand_like_kernel,
        out_shape=jax.ShapeDtypeStruct(PAD_SHAPE, jnp.float32),
        in_specs=[pl.BlockSpec(memory_space=pltpu.SMEM)],          # scalar seed
        out_specs=pl.BlockSpec(PAD_SHAPE, lambda: (0, 0)),         # lane-dense tile
    )(seed_arr)

    # Valid elements live at row 0, cols 0..n-1 (row-major flattening of x1).
    return rand_pad[0, :n].reshape(orig_shape).astype(x1.dtype)


if __name__ == "__main__":
    key = jax.random.PRNGKey(0)
    k_x, k_seed = jax.random.split(key)

    x1 = jax.random.normal(k_x, (1, 2, 2), dtype=jnp.float32)
    # Fresh seed per call so repeated forward passes give new randomness,
    # matching torch.rand_like semantics.
    seed = jax.random.randint(k_seed, (), 0, jnp.iinfo(jnp.int32).max,
                              dtype=jnp.int32)

    x3 = model_forward(x1, seed)
    jax.block_until_ready(x3)

    assert x3.shape == x1.shape and x3.dtype == x1.dtype
    assert bool(jnp.all(x3 >= 0.0)) and bool(jnp.all(x3 < 1.0))
    print("KERNEL_OK")
</pallas_src>

<mosaic_0001>
module attributes {stable_mosaic.version = 11 : i64} {
  func.func @_rand_like_kernel(%arg0: memref<1xi32, #tpu.memory_space<smem>>, %arg1: memref<8x128xf32, #tpu.memory_space<vmem>>) attributes {dimension_semantics = [], scalar_prefetch = 0 : i64, scratch_operands = 0 : i64, tpu.core_type = #tpu.core_type<tc>} {
    %0 = tpu.iota {dimensions = array<i32: 0>} : vector<8x128xi32>
    %1 = tpu.iota {dimensions = array<i32: 1>} : vector<8x128xi32>
    %c128_i32 = arith.constant 128 : i32
    %2 = vector.broadcast %c128_i32 : i32 to vector<8x128xi32>
    %3 = arith.muli %0, %2 : vector<8x128xi32>
    %4 = arith.addi %3, %1 : vector<8x128xi32>
    %c0 = arith.constant 0 : index
    %5 = memref.load %arg0[%c0] : memref<1xi32, #tpu.memory_space<smem>>
    %c1_i32 = arith.constant 1 : i32
    %6 = arith.addi %5, %c1_i32 : i32
    %c-1640531527_i32 = arith.constant -1640531527 : i32
    %7 = arith.muli %6, %c-1640531527_i32 : i32
    %8 = vector.broadcast %7 : i32 to vector<8x128xi32>
    %9 = arith.addi %4, %8 : vector<8x128xi32>
    %c16_i32 = arith.constant 16 : i32
    %10 = vector.broadcast %c16_i32 : i32 to vector<8x128xi32>
    %11 = arith.shrui %9, %10 : vector<8x128xi32>
    %12 = arith.xori %9, %11 : vector<8x128xi32>
    %c2146121005_i32 = arith.constant 2146121005 : i32
    %13 = vector.broadcast %c2146121005_i32 : i32 to vector<8x128xi32>
    %14 = arith.muli %12, %13 : vector<8x128xi32>
    %c15_i32 = arith.constant 15 : i32
    %15 = vector.broadcast %c15_i32 : i32 to vector<8x128xi32>
    %16 = arith.shrui %14, %15 : vector<8x128xi32>
    %17 = arith.xori %14, %16 : vector<8x128xi32>
    %c-2073254261_i32 = arith.constant -2073254261 : i32
    %18 = vector.broadcast %c-2073254261_i32 : i32 to vector<8x128xi32>
    %19 = arith.muli %17, %18 : vector<8x128xi32>
    %c16_i32_0 = arith.constant 16 : i32
    %20 = vector.broadcast %c16_i32_0 : i32 to vector<8x128xi32>
    %21 = arith.shrui %19, %20 : vector<8x128xi32>
    %22 = arith.xori %19, %21 : vector<8x128xi32>
    %c-2048144789_i32 = arith.constant -2048144789 : i32
    %23 = vector.broadcast %c-2048144789_i32 : i32 to vector<8x128xi32>
    %24 = arith.xori %22, %23 : vector<8x128xi32>
    %c16_i32_1 = arith.constant 16 : i32
    %25 = vector.broadcast %c16_i32_1 : i32 to vector<8x128xi32>
    %26 = arith.shrui %24, %25 : vector<8x128xi32>
    %27 = arith.xori %24, %26 : vector<8x128xi32>
    %c2146121005_i32_2 = arith.constant 2146121005 : i32
    %28 = vector.broadcast %c2146121005_i32_2 : i32 to vector<8x128xi32>
    %29 = arith.muli %27, %28 : vector<8x128xi32>
    %c15_i32_3 = arith.constant 15 : i32
    %30 = vector.broadcast %c15_i32_3 : i32 to vector<8x128xi32>
    %31 = arith.shrui %29, %30 : vector<8x128xi32>
    %32 = arith.xori %29, %31 : vector<8x128xi32>
    %c-2073254261_i32_4 = arith.constant -2073254261 : i32
    %33 = vector.broadcast %c-2073254261_i32_4 : i32 to vector<8x128xi32>
    %34 = arith.muli %32, %33 : vector<8x128xi32>
    %c16_i32_5 = arith.constant 16 : i32
    %35 = vector.broadcast %c16_i32_5 : i32 to vector<8x128xi32>
    %36 = arith.shrui %34, %35 : vector<8x128xi32>
    %37 = arith.xori %34, %36 : vector<8x128xi32>
    %c9_i32 = arith.constant 9 : i32
    %38 = vector.broadcast %c9_i32 : i32 to vector<8x128xi32>
    %39 = arith.shrui %37, %38 : vector<8x128xi32>
    %c1065353216_i32 = arith.constant 1065353216 : i32
    %40 = vector.broadcast %c1065353216_i32 : i32 to vector<8x128xi32>
    %41 = arith.ori %39, %40 : vector<8x128xi32>
    %42 = tpu.bitcast %41 : vector<8x128xi32> -> vector<8x128xf32>
    %cst = arith.constant 1.000000e+00 : f32
    %43 = vector.broadcast %cst : f32 to vector<8x128xf32>
    %44 = arith.subf %42, %43 : vector<8x128xf32>
    %c0_6 = arith.constant 0 : index
    %c0_7 = arith.constant 0 : index
    %45 = vector.load %arg1[%c0_6, %c0_7] : memref<8x128xf32, #tpu.memory_space<vmem>>, vector<8x128xf32>
    tpu.vector_store %arg1[%c0_6, %c0_7], %44 {strides = array<i32>} : memref<8x128xf32, #tpu.memory_space<vmem>>, vector<8x128xf32>,
    return
  }
}

</mosaic_0001>

<llo_original>
// kernel: tpu_custom_call.1
$region0: #{tpu_custom_call.1}
  #allocation0 [shape = 'u32[]', space=smem, size = 0x4, offset = 0x4, fixed_abs, tag = 'smem constant byte address 0x4 - core index']
  #allocation1 [shape = 'u32[72,128]{1,0:T(1,128)}', space=vmem, size = 0x9000, scoped, tag = 'internal scratch']
  #allocation2 [shape = 's32[1]{0:T(128)S(6)}', space=smem, size = 0x200, scoped, tag = 'scoped memory for tpu_custom_call.1']
  %s0 = inlined_call_operand.<no memory space> [shape: s32[1], index: 0, kind: input, shape index: {}]
  %s1 = inlined_call_operand.hbm [shape: f32[8,128], index: 1, kind: output, shape index: {}]
  %s2 = sld [smem:[#allocation0]]
  $region14: #{tpu_custom_call.1} parent=0
    _
  %s4 = ssub.s32 1, %s2
  %s5 = scalar_select 0, %s4, %s2
  %6 = sst [smem:[#allocation2]] %s0
  $region1: #{tpu_custom_call.1} parent=0
    #allocation3 [shape = 'u8[4096]{0}', space=vmem, size = 0x1000, scoped, tag = 'output window, operand 0, single buffered']
    #allocation4 [shape = 's32[1]{0}', space=sflag, size = 0x4, scoped, tag = 'scoped memory for tpu_custom_call.1']
    %7 = vsyncpa [#allocation4], 0
    // Predicated region
    $region2: #{tpu_custom_call.1} parent=1 // pred_check
      _
    $region3: #{tpu_custom_call.1} parent=1 // pred_check_branch
      %9 = sbr.rel (0) target = $region5
    $region4: #{tpu_custom_call.1} parent=1 // pred_region
      _
    $region5: #{tpu_custom_call.1} parent=1 // pred_fallthru
      _
    %v10 = vlaneseq
    %v11 = vshrl.u32 %v10, 7
    %v12 = vlaneseq
    %v13 = vand.u32 %v12, 127
    %v14 = vmul.u32 %v11, 128
    %v15 = vadd.s32 %v14, %v13
    %s16 = sld [smem:[#allocation2]]
    %s17 = sadd.s32 %s16, 1
    %s18 = smul.u32 %s17, 2654435769
    %v19 = vstv %s18
    %v20 = vadd.s32 %v15, %v19
    %v21 = vshrl.u32 %v20, 16
    %v22 = vxor.u32 %v20, %v21
    %v23 = vmul.u32 %v22, 2146121005
    %v24 = vshrl.u32 %v23, 15
    %v25 = vxor.u32 %v23, %v24
    %v26 = vmul.u32 %v25, 2221713035
    %v27 = vshrl.u32 %v26, 16
    %v28 = vxor.u32 %v26, %v27
    %v29 = vxor.u32 %v28, 2246822507
    %v30 = vshrl.u32 %v29, 16
    %v31 = vxor.u32 %v29, %v30
    %v32 = vmul.u32 %v31, 2146121005
    %v33 = vshrl.u32 %v32, 15
    %v34 = vxor.u32 %v32, %v33
    %v35 = vmul.u32 %v34, 2221713035
    %v36 = vshrl.u32 %v35, 16
    %v37 = vxor.u32 %v35, %v36
    %v38 = vshrl.u32 %v37, 9
    %v39 = vor.u32 %v38, 1065353216
    %v41 = vsub.f32 %v39, 1.0
    %42 = vst [vmem:[#allocation3] sm:$0xff] %v41
    // Predicated region
    $region6: #{tpu_custom_call.1} parent=1 // pred_check
      _
    $region7: #{tpu_custom_call.1} parent=1 // pred_check_branch
      %44 = sbr.rel (0) target = $region9
    $region8: #{tpu_custom_call.1} parent=1 // pred_region
      %46 = vsyncadd [#allocation4], 0
      %s48 = sshll.u32 [#allocation3], 4
      %s49 = int_to_ptr.vmem [resolvable:$true] %s48
      %s50 = sshll.u32 %s1, 4
      %s51 = int_to_ptr.hbm [resolvable:$true] %s50
      %53 = dma.vmem_to_hbm [thread:$0]  %s49, 128, %s51, [#allocation4]
    $region9: #{tpu_custom_call.1} parent=1 // pred_fallthru
      _
    // Predicated region
    $region10: #{tpu_custom_call.1} parent=1 // pred_check
      _
    $region11: #{tpu_custom_call.1} parent=1 // pred_check_branch
      %55 = sbr.rel (0) target = $region13
    $region12: #{tpu_custom_call.1} parent=1 // pred_region
      %57 = dma.done [#allocation4], 128
    $region13: #{tpu_custom_call.1} parent=1 // pred_fallthru
      _
    %58 = vsyncpa [#allocation4], 1

</llo_original>
